<compile_context>
chip_gen: v6e
topology: v6e:2x2x1
jax: 0.10.0
libtpu: 0.0.40
codegen_flags: <defaults>
</compile_context>

<pallas_src>
import jax
import jax.numpy as jnp
import numpy as np
from jax import lax
from jax.experimental import pallas as pl
from jax.experimental.pallas import tpu as pltpu


def pos_enc_kernel(freq_ref, sel_ref, x_ref, o_ref):
    """One (row-tile, time-tile) block.

    freq_ref: (Rt, 1)  per-row angular frequency (inv_freq[c mod C/2], tiled over batch)
    sel_ref : (Rt, 1)  1.0 -> cos row (second half of channels), 0.0 -> sin row
    x_ref   : (Rt, Tt) input rows (flattened [B*C, T])
    o_ref   : (Rt, Tt) output rows
    """
    rt, tt = x_ref.shape
    t0 = (pl.program_id(1) * tt).astype(jnp.float32)

    # Time index for this tile, broadcast across rows (int iota -> f32 for safe lowering).
    t_idx = lax.broadcasted_iota(jnp.int32, (rt, tt), 1).astype(jnp.float32) + t0

    arg = t_idx * freq_ref[...]                       # (Rt, Tt)
    sel = sel_ref[...]                                # (Rt, 1) broadcasts over lanes
    pe = sel * jnp.cos(arg) + (1.0 - sel) * jnp.sin(arg)

    o_ref[...] = (x_ref[...].astype(jnp.float32) + pe).astype(o_ref.dtype)


def _pick_tile(dim, unit, max_tile):
    """Largest tile <= max_tile that is either the full dim or a multiple of `unit` dividing dim."""
    if dim <= max_tile:
        return dim
    t = (max_tile // unit) * unit
    while t >= unit:
        if dim % t == 0:
            return t
        t -= unit
    return dim  # fallback: single block along this dim


@jax.jit
def positional_encoding_forward(x):
    """x: [Batch, Channels, Time] (PyTorch layout). Returns x + sinusoidal PE, same shape."""
    B, C, T = x.shape
    assert C % 2 == 0, "Positional_Encoding requires an even channel count"
    R = B * C
    half = C // 2

    # Same formula as the PyTorch buffer: 1 / 10000 ** (arange(0, C, 2) / C)
    inv_freq = 1.0 / (10000.0 ** (jnp.arange(0.0, C, 2.0, dtype=jnp.float32) / jnp.float32(C)))
    freq_c = jnp.concatenate([inv_freq, inv_freq], axis=0)                       # [C]
    sel_c = jnp.concatenate([jnp.zeros((half,), jnp.float32),
                             jnp.ones((half,), jnp.float32)], axis=0)            # [C]
    freq_rows = jnp.tile(freq_c, (B,))[:, None]                                  # [B*C, 1]
    sel_rows = jnp.tile(sel_c, (B,))[:, None]                                    # [B*C, 1]

    rt = _pick_tile(R, 8, 256)      # rows per block (sublane-aligned)
    tt = _pick_tile(T, 128, 1024)   # time per block (lane-aligned for realistic T)

    x2 = x.reshape(R, T)            # free reshape (contiguous), no transpose

    out2 = pl.pallas_call(
        pos_enc_kernel,
        out_shape=jax.ShapeDtypeStruct((R, T), x.dtype),
        grid_spec=pltpu.PrefetchScalarGridSpec(
            num_scalar_prefetch=0,
            grid=(R // rt, T // tt),
            in_specs=[
                pl.BlockSpec((rt, 1), lambda ri, ti: (ri, 0)),    # freq (resident per row-tile)
                pl.BlockSpec((rt, 1), lambda ri, ti: (ri, 0)),    # sin/cos selector
                pl.BlockSpec((rt, tt), lambda ri, ti: (ri, ti)),  # x
            ],
            out_specs=pl.BlockSpec((rt, tt), lambda ri, ti: (ri, ti)),
        ),
        compiler_params=pltpu.CompilerParams(
            dimension_semantics=("parallel", "parallel")),
    )(freq_rows, sel_rows, x2)

    return out2.reshape(B, C, T)


def positional_encoding_reference(x):
    """Plain-JAX mirror of the PyTorch forward, for verification."""
    B, C, T = x.shape
    inv_freq = 1.0 / (10000.0 ** (jnp.arange(0.0, C, 2.0, dtype=jnp.float32) / jnp.float32(C)))
    pos = jnp.arange(T, dtype=x.dtype)
    sinusoid = inv_freq[:, None] * pos[None, :]                          # [C/2, T]
    pe = jnp.concatenate([jnp.sin(sinusoid), jnp.cos(sinusoid)], axis=0)  # [C, T]
    return x + pe[None]


if __name__ == "__main__":
    # Small shapes consistent with the module: x: [Batch, Channels, Time]
    B, C, T = 2, 8, 16
    key = jax.random.PRNGKey(0)
    x = jax.random.normal(key, (B, C, T), jnp.float32)

    out = positional_encoding_forward(x)
    out = jax.block_until_ready(out)

    ref = positional_encoding_reference(x)
    np.testing.assert_allclose(np.asarray(out), np.asarray(ref), rtol=1e-5, atol=1e-5)

    print("KERNEL_OK")
</pallas_src>

<mosaic_0001>
module attributes {stable_mosaic.version = 11 : i64} {
  func.func @pos_enc_kernel(%arg0: i32, %arg1: i32, %arg2: memref<16x1xf32, #tpu.memory_space<vmem>>, %arg3: memref<16x1xf32, #tpu.memory_space<vmem>>, %arg4: memref<16x16xf32, #tpu.memory_space<vmem>>, %arg5: memref<16x16xf32, #tpu.memory_space<vmem>>) attributes {dimension_semantics = [#tpu.dimension_semantics<parallel>, #tpu.dimension_semantics<parallel>], iteration_bounds = array<i64: 1, 1>, scalar_prefetch = 0 : i64, scratch_operands = 0 : i64, tpu.core_type = #tpu.core_type<tc>, window_params = [{transform_indices = @transform_0, window_bounds = array<i64: 16, 1>}, {transform_indices = @transform_1, window_bounds = array<i64: 16, 1>}, {transform_indices = @transform_2, window_bounds = array<i64: 16, 16>}, {transform_indices = @transform_3, window_bounds = array<i64: 16, 16>}]} {
    %c16_i32 = arith.constant 16 : i32
    %0 = arith.muli %arg1, %c16_i32 : i32
    %1 = arith.sitofp %0 : i32 to f32
    %2 = tpu.iota {dimensions = array<i32: 1>} : vector<16x16xi32>
    %3 = arith.sitofp %2 : vector<16x16xi32> to vector<16x16xf32>
    %4 = vector.broadcast %1 : f32 to vector<16x16xf32>
    %5 = arith.addf %3, %4 : vector<16x16xf32>
    %c0 = arith.constant 0 : index
    %c0_0 = arith.constant 0 : index
    %6 = vector.load %arg2[%c0, %c0_0] : memref<16x1xf32, #tpu.memory_space<vmem>>, vector<16x1xf32>
    %7 = vector.broadcast %6 : vector<16x1xf32> to vector<16x16xf32>
    %8 = arith.mulf %5, %7 : vector<16x16xf32>
    %c0_1 = arith.constant 0 : index
    %c0_2 = arith.constant 0 : index
    %9 = vector.load %arg3[%c0_1, %c0_2] : memref<16x1xf32, #tpu.memory_space<vmem>>, vector<16x1xf32>
    %10 = math.cos %8 : vector<16x16xf32>
    %11 = vector.broadcast %9 : vector<16x1xf32> to vector<16x16xf32>
    %12 = arith.mulf %11, %10 : vector<16x16xf32>
    %cst = arith.constant 1.000000e+00 : f32
    %13 = vector.broadcast %cst : f32 to vector<16x1xf32>
    %14 = arith.subf %13, %9 : vector<16x1xf32>
    %15 = math.sin %8 : vector<16x16xf32>
    %16 = vector.broadcast %14 : vector<16x1xf32> to vector<16x16xf32>
    %17 = arith.mulf %16, %15 : vector<16x16xf32>
    %18 = arith.addf %12, %17 : vector<16x16xf32>
    %c0_3 = arith.constant 0 : index
    %c0_4 = arith.constant 0 : index
    %19 = vector.load %arg4[%c0_3, %c0_4] : memref<16x16xf32, #tpu.memory_space<vmem>>, vector<16x16xf32>
    %20 = arith.addf %19, %18 : vector<16x16xf32>
    %c0_5 = arith.constant 0 : index
    %c0_6 = arith.constant 0 : index
    %21 = vector.load %arg5[%c0_5, %c0_6] : memref<16x16xf32, #tpu.memory_space<vmem>>, vector<16x16xf32>
    tpu.vector_store %arg5[%c0_5, %c0_6], %20 {strides = array<i32>} : memref<16x16xf32, #tpu.memory_space<vmem>>, vector<16x16xf32>,
    return
  }
  func.func @transform_0(%arg0: i32, %arg1: i32) -> (i32, i32) {
    %c0_i32 = arith.constant 0 : i32
    %c0_i32_0 = arith.constant 0 : i32
    return %arg0, %c0_i32 : i32, i32
  }
  func.func @transform_1(%arg0: i32, %arg1: i32) -> (i32, i32) {
    %c0_i32 = arith.constant 0 : i32
    %c0_i32_0 = arith.constant 0 : i32
    return %arg0, %c0_i32 : i32, i32
  }
  func.func @transform_2(%arg0: i32, %arg1: i32) -> (i32, i32) {
    %c0_i32 = arith.constant 0 : i32
    return %arg0, %arg1 : i32, i32
  }
  func.func @transform_3(%arg0: i32, %arg1: i32) -> (i32, i32) {
    %c0_i32 = arith.constant 0 : i32
    return %arg0, %arg1 : i32, i32
  }
}

</mosaic_0001>

<llo_original>
// kernel: tile.1
$region0: #{tile.1}
  %s0 = inlined_call_operand.vmem [shape: f32[2,8], index: 0, kind: input, shape index: {}]
  %s1 = inlined_call_operand.vmem [shape: f32[16,1], index: 1, kind: output, shape index: {}]
  $region1: #{tile.1} parent=0
    #allocation0 [shape = 'u8[4096]{0}', space=vmem, size = 0x1000, scoped, tag = 'scoped mem for input reshape']
    %s3 = sshll.u32 1, 2
    %s4 = ssub.s32 %s3, 1
    %v5 = vld [vmem:[%s0] sm:%s4]
    %6 = vst [vmem:[#allocation0] sm:%s4] %v5
    %v7 = vld [vmem:[#allocation0] sm:$0x3]
    %vm8 = vcmask 7168
    %9 = vst.msk [vmem:[%s1] ss:$8 sm:$0x3] %vm8, %v7
    %v10 = vld [vmem:[#allocation0] sm:$0x3]
    %11 = vrot.lane.b32.xlu0 %v10, 127
    %v12 = vpop.permute.xlu0 %11
    %vm13 = vcmask 7168
    %s14 = scalar_lea.vmem %s1, 1
    %15 = vst.msk [vmem:[%s14] ss:$8 sm:$0x3] %vm13, %v12
    %v16 = vld [vmem:[#allocation0] sm:$0x3]
    %17 = vrot.lane.b32.xlu0 %v16, 126
    %v18 = vpop.permute.xlu0 %17
    %vm19 = vcmask 7168
    %s20 = scalar_lea.vmem %s1, 2
    %21 = vst.msk [vmem:[%s20] ss:$8 sm:$0x3] %vm19, %v18
    %v22 = vld [vmem:[#allocation0] sm:$0x3]
    %23 = vrot.lane.b32.xlu0 %v22, 125
    %v24 = vpop.permute.xlu0 %23
    %vm25 = vcmask 7168
    %s26 = scalar_lea.vmem %s1, 3
    %27 = vst.msk [vmem:[%s26] ss:$8 sm:$0x3] %vm25, %v24
    %v28 = vld [vmem:[#allocation0] sm:$0x3]
    %29 = vrot.lane.b32.xlu0 %v28, 124
    %v30 = vpop.permute.xlu0 %29
    %vm31 = vcmask 7168
    %s32 = scalar_lea.vmem %s1, 4
    %33 = vst.msk [vmem:[%s32] ss:$8 sm:$0x3] %vm31, %v30
    %v34 = vld [vmem:[#allocation0] sm:$0x3]
    %35 = vrot.lane.b32.xlu0 %v34, 123
    %v36 = vpop.permute.xlu0 %35
    %vm37 = vcmask 7168
    %s38 = scalar_lea.vmem %s1, 5
    %39 = vst.msk [vmem:[%s38] ss:$8 sm:$0x3] %vm37, %v36
    %v40 = vld [vmem:[#allocation0] sm:$0x3]
    %41 = vrot.lane.b32.xlu0 %v40, 122
    %v42 = vpop.permute.xlu0 %41
    %vm43 = vcmask 7168
    %s44 = scalar_lea.vmem %s1, 6
    %45 = vst.msk [vmem:[%s44] ss:$8 sm:$0x3] %vm43, %v42
    %v46 = vld [vmem:[#allocation0] sm:$0x3]
    %47 = vrot.lane.b32.xlu0 %v46, 121
    %v48 = vpop.permute.xlu0 %47
    %vm49 = vcmask 7168
    %s50 = scalar_lea.vmem %s1, 7
    %51 = vst.msk [vmem:[%s50] ss:$8 sm:$0x3] %vm49, %v48

// kernel: tile.12
$region0: #{tile.12}
  #allocation0 [shape = 's32[1]{0}', space=sflag, size = 0x4, scoped, tag = 'scoped memory for tile.12']
  %s0 = inlined_call_operand.vmem [shape: f32[8], index: 0, kind: input, shape index: {}]
  %s1 = inlined_call_operand.vmem [shape: f32[2,8], index: 1, kind: output, shape index: {}]
  // Predicated region
  $region2: #{tile.12} parent=0 // pred_check
    _
  $region3: #{tile.12} parent=0 // pred_check_branch
    %3 = sbr.rel (0) target = $region5
  $region4: #{tile.12} parent=0 // pred_region
    _
  $region5: #{tile.12} parent=0 // pred_fallthru
    _
  %v4 = vld [vmem:[%s0] ss:$0 sm:$0xff]
  %5 = vst [vmem:[%s1] sm:$0x3] %v4

// kernel: positional_encoding_forward.1
$region0: #{positional_encoding_forward.1}
  #allocation0 [shape = 'u32[]', space=smem, size = 0x4, offset = 0x4, fixed_abs, tag = 'smem constant byte address 0x4 - core index']
  #allocation1 [shape = 'u32[144,128]{1,0:T(1,128)}', space=vmem, size = 0x12000, scoped, tag = 'internal scratch']
  %s0 = inlined_call_operand.vmem [shape: f32[16,1], index: 0, kind: input, shape index: {}]
  %s1 = inlined_call_operand.vmem [shape: f32[16,1], index: 1, kind: input, shape index: {}]
  %s2 = inlined_call_operand.vmem [shape: f32[16,16], index: 2, kind: input, shape index: {}]
  %s3 = inlined_call_operand.hbm [shape: f32[16,16], index: 3, kind: output, shape index: {}]
  %s4 = sld [smem:[#allocation0]]
  $region22: #{positional_encoding_forward.1} parent=0
    _
  %s6 = ssub.s32 1, %s4
  %s7 = scalar_select 0, %s6, %s4
  $region1: #{positional_encoding_forward.1} parent=0
    #allocation2 [shape = 'u8[8192]{0}', space=vmem, size = 0x2000, scoped, tag = 'output window, operand 0, single buffered']
    #allocation3 [shape = 's32[1]{0}', space=sflag, size = 0x4, scoped, tag = 'scoped memory for positional_encoding_forward.1']
    %8 = vsyncpa [#allocation3], 0
    // Predicated region
    $region2: #{positional_encoding_forward.1} parent=1 // pred_check
      _
    $region3: #{positional_encoding_forward.1} parent=1 // pred_check_branch
      %10 = sbr.rel (0) target = $region5
    $region4: #{positional_encoding_forward.1} parent=1 // pred_region
      _
    $region5: #{positional_encoding_forward.1} parent=1 // pred_fallthru
      _
    // Predicated region
    $region6: #{positional_encoding_forward.1} parent=1 // pred_check
      _
    $region7: #{positional_encoding_forward.1} parent=1 // pred_check_branch
      %12 = sbr.rel (0) target = $region9
    $region8: #{positional_encoding_forward.1} parent=1 // pred_region
      _
    $region9: #{positional_encoding_forward.1} parent=1 // pred_fallthru
      _
    // Predicated region
    $region10: #{positional_encoding_forward.1} parent=1 // pred_check
      _
    $region11: #{positional_encoding_forward.1} parent=1 // pred_check_branch
      %14 = sbr.rel (0) target = $region13
    $region12: #{positional_encoding_forward.1} parent=1 // pred_region
      _
    $region13: #{positional_encoding_forward.1} parent=1 // pred_fallthru
      _
    %s15 = smul.u32 0, 16
    %s16 = scvt.s32.f32 %s15
    %v17 = vlaneseq
    %v18 = vand.u32 %v17, 127
    %v19 = vcvt.s32.f32 %v18
    %v20 = vstv %s16
    %v21 = vadd.f32 %v19, %v20
    %v22 = vld [vmem:[%s0] sm:$0xff]
    %v23 = vld [vmem:[%s0 + $0x8] sm:$0xff]
    %25 = vset.pattern.permute.xlu0 0
    %26 = vperm.xlu0 %25, %v22
    %v27 = vpop.permute.xlu0 %26
    %30 = vset.pattern.permute.xlu0 0
    %31 = vperm.xlu0 %30, %v23
    %v32 = vpop.permute.xlu0 %31
    %v34 = vmul.f32 %v21, %v27
    %v35 = vmul.f32 %v21, %v32
    %v36 = vld [vmem:[%s1] sm:$0xff]
    %v37 = vld [vmem:[%s1 + $0x8] sm:$0xff]
    %v38 = vand.u32 2147483647, %v34
    %vm39 = vcmp.le.f32.partialorder %v38, 0.7853982
    %vm40 = vcmp.lt.s32.totalorder %v34, 0
    %v41 = vand.u32 %v34, 2139095040
    %v42 = vshrl.u32 %v41, 23
    %v43 = vsub.s32 %v42, 127
    %v44 = vand.u32 2147483647, %v34
    %v45 = vand.u32 %v44, 8388607
    %v46 = vor.u32 %v45, 8388608
    %v47 = vsub.s32 0, %v46
    %v48 = vadd.s32 %v43, 1
    %vm49 = vcmp.gt.s32.totalorder %v48, 0
    %v50 = vsel %vm49, %v48, 0
    %v51 = vshrl.u32 %v50, 5
    %v52 = vand.u32 %v50, 31
    %v53 = vsub.s32 32, %v52
    %v54 = vshrl.u32 683565275, %v53
    %v55 = vshll.u32 683565275, %v52
    %v56 = vshrl.u32 2475754826, %v53
    %v57 = vor.u32 %v55, %v56
    %v58 = vshll.u32 2475754826, %v52
    %v59 = vshrl.u32 2131351028, %v53
    %v60 = vor.u32 %v58, %v59
    %v61 = vshll.u32 2131351028, %v52
    %v62 = vshrl.u32 2102212464, %v53
    %v63 = vor.u32 %v61, %v62
    %v64 = vshll.u32 2102212464, %v52
    %v65 = vshrl.u32 920167782, %v53
    %v66 = vor.u32 %v64, %v65
    %v67 = vshll.u32 920167782, %v52
    %v68 = vshrl.u32 1326507024, %v53
    %v69 = vor.u32 %v67, %v68
    %vm70 = vcmp.lt.s32.totalorder %v51, 1
    %vm71 = vcmp.lt.s32.totalorder %v51, 2
    %vm72 = vcmp.lt.s32.totalorder %v51, 3
    %vm73 = vcmp.lt.s32.totalorder %v51, 4
    %v74 = vsel %vm70, %v54, %v57
    %v75 = vsel %vm73, %v63, 2102212464
    %v76 = vsel %vm72, %v60, %v75
    %v77 = vsel %vm71, %v74, %v76
    %v78 = vsel %vm70, %v57, %v60
    %v79 = vsel %vm73, %v66, 920167782
    %v80 = vsel %vm72, %v63, %v79
    %v81 = vsel %vm71, %v78, %v80
    %v82 = vsel %vm70, %v60, %v63
    %v83 = vsel %vm73, %v69, 1326507024
    %v84 = vsel %vm72, %v66, %v83
    %v85 = vsel %vm71, %v82, %v84
    %v86 = vshll.u32 %v46, 8
    %v87 = vmul.u32.u64.compose %v86, %v85
    %v88 = vextract.low.u32 %v87
    %v89 = vextract.high.u32 %v87
    %v90 = vmul.u32.u64.compose %v86, %v81
    %v91 = vextract.low.u32 %v90
    %v92 = vextract.high.u32 %v90
    %v93 = vmul.u32 %v86, %v77
    %v94 = vadd.s32 %v89, %v91
    %vm95 = vc.u32 %v89, %v91
    %v96 = vadd.s32 %v92, 1
    %v97 = vsel %vm95, %v96, %v92
    %v98 = vadd.s32 %v93, %v97
    %v99 = vadd.s32 %v98, 536870912
    %v100 = vshrl.u32 %v99, 30
    %v101 = vshll.u32 %v100, 30
    %v102 = vsub.s32 %v98, %v101
    %vm103 = vcmp.lt.s32.totalorder %v102, 0
    %v104 = vsub.s32 0, %v102
    %v105 = vsel %vm103, %v104, %v102
    %v106 = vclz %v105
    %v107 = vsub.s32 %v106, 2
    %vm108 = vcmp.gt.s32.totalorder 0, %v107
    %v109 = vsel %vm108, 0, %v107
    %v110 = vsub.s32 32, %v109
    %v111 = vshll.u32 %v102, %v109
    %v112 = vshrl.u32 %v94, %v110
    %v113 = vor.u32 %v111, %v112
    %v114 = vsub.s32 4294967266, %v109
    %v115 = vadd.s32 %v114, 127
    %v116 = vshll.u32 %v115, 23
    %v117 = vor.u32 4788187, %v116
    %v118 = vand.u32 2147483647, %v117
    %v120 = vcvt.s32.f32 %v113
    %v121 = vmul.f32 %v120, %v118
    %v122 = vxor.u32 %v121, 2147483648
    %v123 = vsel %vm40, %v122, %v121
    %v124 = vsub.s32 4, %v100
    %v125 = vsel %vm40, %v124, %v100
    %v126 = vsel %vm39, %v34, %v123
    %v127 = vsel %vm39, 0, %v125
    %v128 = vcosq.f32.pop %v126
    %v129 = vsinq.f32.pop %v126
    %vm130 = vweird.f32 %v34
    %v131 = vand.u32 %v127, 3
    %vm132 = vcmp.lt.s32.totalorder %v131, 2
    %vm133 = vcmp.eq.s32.totalorder %v131, 0
    %v134 = vxor.u32 %v129, 2147483648
    %v135 = vsel %vm133, %v128, %v134
    %vm136 = vcmp.eq.s32.totalorder %v131, 2
    %v137 = vxor.u32 %v128, 2147483648
    %v138 = vsel %vm136, %v137, %v129
    %v139 = vsel %vm132, %v135, %v138
    %v140 = vsel %vm130, nan, %v139
    %v141 = vand.u32 2147483647, %v35
    %vm142 = vcmp.le.f32.partialorder %v141, 0.7853982
    %vm143 = vcmp.lt.s32.totalorder %v35, 0
    %v144 = vand.u32 %v35, 2139095040
    %v145 = vshrl.u32 %v144, 23
    %v146 = vsub.s32 %v145, 127
    %v147 = vand.u32 2147483647, %v35
    %v148 = vand.u32 %v147, 8388607
    %v149 = vor.u32 %v148, 8388608
    %v150 = vsub.s32 0, %v149
    %v151 = vadd.s32 %v146, 1
    %vm152 = vcmp.gt.s32.totalorder %v151, 0
    %v153 = vsel %vm152, %v151, 0
    %v154 = vshrl.u32 %v153, 5
    %v155 = vand.u32 %v153, 31
    %v156 = vsub.s32 32, %v155
    %v157 = vshrl.u32 683565275, %v156
    %v158 = vshll.u32 683565275, %v155
    %v159 = vshrl.u32 2475754826, %v156
    %v160 = vor.u32 %v158, %v159
    %v161 = vshll.u32 2475754826, %v155
    %v162 = vshrl.u32 2131351028, %v156
    %v163 = vor.u32 %v161, %v162
    %v164 = vshll.u32 2131351028, %v155
    %v165 = vshrl.u32 2102212464, %v156
    %v166 = vor.u32 %v164, %v165
    %v167 = vshll.u32 2102212464, %v155
    %v168 = vshrl.u32 920167782, %v156
    %v169 = vor.u32 %v167, %v168
    %v170 = vshll.u32 920167782, %v155
    %v171 = vshrl.u32 1326507024, %v156
    %v172 = vor.u32 %v170, %v171
    %vm173 = vcmp.lt.s32.totalorder %v154, 1
    %vm174 = vcmp.lt.s32.totalorder %v154, 2
    %vm175 = vcmp.lt.s32.totalorder %v154, 3
    %vm176 = vcmp.lt.s32.totalorder %v154, 4
    %v177 = vsel %vm173, %v157, %v160
    %v178 = vsel %vm176, %v166, 2102212464
    %v179 = vsel %vm175, %v163, %v178
    %v180 = vsel %vm174, %v177, %v179
    %v181 = vsel %vm173, %v160, %v163
    %v182 = vsel %vm176, %v169, 920167782
    %v183 = vsel %vm175, %v166, %v182
    %v184 = vsel %vm174, %v181, %v183
    %v185 = vsel %vm173, %v163, %v166
    %v186 = vsel %vm176, %v172, 1326507024
    %v187 = vsel %vm175, %v169, %v186
    %v188 = vsel %vm174, %v185, %v187
    %v189 = vshll.u32 %v149, 8
    %v190 = vmul.u32.u64.compose %v189, %v188
    %v191 = vextract.low.u32 %v190
    %v192 = vextract.high.u32 %v190
    %v193 = vmul.u32.u64.compose %v189, %v184
    %v194 = vextract.low.u32 %v193
    %v195 = vextract.high.u32 %v193
    %v196 = vmul.u32 %v189, %v180
    %v197 = vadd.s32 %v192, %v194
    %vm198 = vc.u32 %v192, %v194
    %v199 = vadd.s32 %v195, 1
    %v200 = vsel %vm198, %v199, %v195
    %v201 = vadd.s32 %v196, %v200
    %v202 = vadd.s32 %v201, 536870912
    %v203 = vshrl.u32 %v202, 30
    %v204 = vshll.u32 %v203, 30
    %v205 = vsub.s32 %v201, %v204
    %vm206 = vcmp.lt.s32.totalorder %v205, 0
    %v207 = vsub.s32 0, %v205
    %v208 = vsel %vm206, %v207, %v205
    %v209 = vclz %v208
    %v210 = vsub.s32 %v209, 2
    %vm211 = vcmp.gt.s32.totalorder 0, %v210
    %v212 = vsel %vm211, 0, %v210
    %v213 = vsub.s32 32, %v212
    %v214 = vshll.u32 %v205, %v212
    %v215 = vshrl.u32 %v197, %v213
    %v216 = vor.u32 %v214, %v215
    %v217 = vsub.s32 4294967266, %v212
    %v218 = vadd.s32 %v217, 127
    %v219 = vshll.u32 %v218, 23
    %v220 = vor.u32 4788187, %v219
    %v221 = vand.u32 2147483647, %v220
    %v223 = vcvt.s32.f32 %v216
    %v224 = vmul.f32 %v223, %v221
    %v225 = vxor.u32 %v224, 2147483648
    %v226 = vsel %vm143, %v225, %v224
    %v227 = vsub.s32 4, %v203
    %v228 = vsel %vm143, %v227, %v203
    %v229 = vsel %vm142, %v35, %v226
    %v230 = vsel %vm142, 0, %v228
    %v231 = vcosq.f32.pop %v229
    %v232 = vsinq.f32.pop %v229
    %vm233 = vweird.f32 %v35
    %v234 = vand.u32 %v230, 3
    %vm235 = vcmp.lt.s32.totalorder %v234, 2
    %vm236 = vcmp.eq.s32.totalorder %v234, 0
    %v237 = vxor.u32 %v232, 2147483648
    %v238 = vsel %vm236, %v231, %v237
    %vm239 = vcmp.eq.s32.totalorder %v234, 2
    %v240 = vxor.u32 %v231, 2147483648
    %v241 = vsel %vm239, %v240, %v232
    %v242 = vsel %vm235, %v238, %v241
    %v243 = vsel %vm233, nan, %v242
    %245 = vset.pattern.permute.xlu0 0
    %246 = vperm.xlu0 %245, %v36
    %v247 = vpop.permute.xlu0 %246
    %250 = vset.pattern.permute.xlu0 0
    %251 = vperm.xlu0 %250, %v37
    %v252 = vpop.permute.xlu0 %251
    %v254 = vmul.f32 %v247, %v140
    %v255 = vmul.f32 %v252, %v243
    %v256 = vsub.f32 1.0, %v36
    %v257 = vsub.f32 1.0, %v37
    %v258 = vand.u32 2147483647, %v34
    %vm259 = vcmp.le.f32.partialorder %v258, 0.7853982
    %vm260 = vcmp.lt.s32.totalorder %v34, 0
    %v261 = vand.u32 %v34, 2139095040
    %v262 = vshrl.u32 %v261, 23
    %v263 = vsub.s32 %v262, 127
    %v264 = vand.u32 2147483647, %v34
    %v265 = vand.u32 %v264, 8388607
    %v266 = vor.u32 %v265, 8388608
    %v267 = vsub.s32 0, %v266
    %v268 = vadd.s32 %v263, 1
    %vm269 = vcmp.gt.s32.totalorder %v268, 0
    %v270 = vsel %vm269, %v268, 0
    %v271 = vshrl.u32 %v270, 5
    %v272 = vand.u32 %v270, 31
    %v273 = vsub.s32 32, %v272
    %v274 = vshrl.u32 683565275, %v273
    %v275 = vshll.u32 683565275, %v272
    %v276 = vshrl.u32 2475754826, %v273
    %v277 = vor.u32 %v275, %v276
    %v278 = vshll.u32 2475754826, %v272
    %v279 = vshrl.u32 2131351028, %v273
    %v280 = vor.u32 %v278, %v279
    %v281 = vshll.u32 2131351028, %v272
    %v282 = vshrl.u32 2102212464, %v273
    %v283 = vor.u32 %v281, %v282
    %v284 = vshll.u32 2102212464, %v272
    %v285 = vshrl.u32 920167782, %v273
    %v286 = vor.u32 %v284, %v285
    %v287 = vshll.u32 920167782, %v272
    %v288 = vshrl.u32 1326507024, %v273
    %v289 = vor.u32 %v287, %v288
    %vm290 = vcmp.lt.s32.totalorder %v271, 1
    %vm291 = vcmp.lt.s32.totalorder %v271, 2
    %vm292 = vcmp.lt.s32.totalorder %v271, 3
    %vm293 = vcmp.lt.s32.totalorder %v271, 4
    %v294 = vsel %vm290, %v274, %v277
    %v295 = vsel %vm293, %v283, 2102212464
    %v296 = vsel %vm292, %v280, %v295
    %v297 = vsel %vm291, %v294, %v296
    %v298 = vsel %vm290, %v277, %v280
    %v299 = vsel %vm293, %v286, 920167782
    %v300 = vsel %vm292, %v283, %v299
    %v301 = vsel %vm291, %v298, %v300
    %v302 = vsel %vm290, %v280, %v283
    %v303 = vsel %vm293, %v289, 1326507024
    %v304 = vsel %vm292, %v286, %v303
    %v305 = vsel %vm291, %v302, %v304
    %v306 = vshll.u32 %v266, 8
    %v307 = vmul.u32.u64.compose %v306, %v305
    %v308 = vextract.low.u32 %v307
    %v309 = vextract.high.u32 %v307
    %v310 = vmul.u32.u64.compose %v306, %v301
    %v311 = vextract.low.u32 %v310
    %v312 = vextract.high.u32 %v310
    %v313 = vmul.u32 %v306, %v297
    %v314 = vadd.s32 %v309, %v311
    %vm315 = vc.u32 %v309, %v311
    %v316 = vadd.s32 %v312, 1
    %v317 = vsel %vm315, %v316, %v312
    %v318 = vadd.s32 %v313, %v317
    %v319 = vadd.s32 %v318, 536870912
    %v320 = vshrl.u32 %v319, 30
    %v321 = vshll.u32 %v320, 30
    %v322 = vsub.s32 %v318, %v321
    %vm323 = vcmp.lt.s32.totalorder %v322, 0
    %v324 = vsub.s32 0, %v322
    %v325 = vsel %vm323, %v324, %v322
    %v326 = vclz %v325
    %v327 = vsub.s32 %v326, 2
    %vm328 = vcmp.gt.s32.totalorder 0, %v327
    %v329 = vsel %vm328, 0, %v327
    %v330 = vsub.s32 32, %v329
    %v331 = vshll.u32 %v322, %v329
    %v332 = vshrl.u32 %v314, %v330
    %v333 = vor.u32 %v331, %v332
    %v334 = vsub.s32 4294967266, %v329
    %v335 = vadd.s32 %v334, 127
    %v336 = vshll.u32 %v335, 23
    %v337 = vor.u32 4788187, %v336
    %v338 = vand.u32 2147483647, %v337
    %v340 = vcvt.s32.f32 %v333
    %v341 = vmul.f32 %v340, %v338
    %v342 = vxor.u32 %v341, 2147483648
    %v343 = vsel %vm260, %v342, %v341
    %v344 = vsub.s32 4, %v320
    %v345 = vsel %vm260, %v344, %v320
    %v346 = vsel %vm259, %v34, %v343
    %v347 = vsel %vm259, 0, %v345
    %v348 = vcosq.f32.pop %v346
    %v349 = vsinq.f32.pop %v346
    %vm350 = vweird.f32 %v34
    %v351 = vadd.s32 %v347, 3
    %v352 = vand.u32 %v351, 3
    %vm353 = vcmp.lt.s32.totalorder %v352, 2
    %vm354 = vcmp.eq.s32.totalorder %v352, 0
    %v355 = vxor.u32 %v349, 2147483648
    %v356 = vsel %vm354, %v348, %v355
    %vm357 = vcmp.eq.s32.totalorder %v352, 2
    %v358 = vxor.u32 %v348, 2147483648
    %v359 = vsel %vm357, %v358, %v349
    %v360 = vsel %vm353, %v356, %v359
    %v361 = vsel %vm350, nan, %v360
    %v362 = vand.u32 2147483647, %v35
    %vm363 = vcmp.le.f32.partialorder %v362, 0.7853982
    %vm364 = vcmp.lt.s32.totalorder %v35, 0
    %v365 = vand.u32 %v35, 2139095040
    %v366 = vshrl.u32 %v365, 23
    %v367 = vsub.s32 %v366, 127
    %v368 = vand.u32 2147483647, %v35
    %v369 = vand.u32 %v368, 8388607
    %v370 = vor.u32 %v369, 8388608
    %v371 = vsub.s32 0, %v370
    %v372 = vadd.s32 %v367, 1
    %vm373 = vcmp.gt.s32.totalorder %v372, 0
    %v374 = vsel %vm373, %v372, 0
    %v375 = vshrl.u32 %v374, 5
    %v376 = vand.u32 %v374, 31
    %v377 = vsub.s32 32, %v376
    %v378 = vshrl.u32 683565275, %v377
    %v379 = vshll.u32 683565275, %v376
    %v380 = vshrl.u32 2475754826, %v377
    %v381 = vor.u32 %v379, %v380
    %v382 = vshll.u32 2475754826, %v376
    %v383 = vshrl.u32 2131351028, %v377
    %v384 = vor.u32 %v382, %v383
    %v385 = vshll.u32 2131351028, %v376
    %v386 = vshrl.u32 2102212464, %v377
    %v387 = vor.u32 %v385, %v386
    %v388 = vshll.u32 2102212464, %v376
    %v389 = vshrl.u32 920167782, %v377
    %v390 = vor.u32 %v388, %v389
    %v391 = vshll.u32 920167782, %v376
    %v392 = vshrl.u32 1326507024, %v377
    %v393 = vor.u32 %v391, %v392
    %vm394 = vcmp.lt.s32.totalorder %v375, 1
    %vm395 = vcmp.lt.s32.totalorder %v375, 2
    %vm396 = vcmp.lt.s32.totalorder %v375, 3
    %vm397 = vcmp.lt.s32.totalorder %v375, 4
    %v398 = vsel %vm394, %v378, %v381
    %v399 = vsel %vm397, %v387, 2102212464
    %v400 = vsel %vm396, %v384, %v399
    %v401 = vsel %vm395, %v398, %v400
    %v402 = vsel %vm394, %v381, %v384
    %v403 = vsel %vm397, %v390, 920167782
    %v404 = vsel %vm396, %v387, %v403
    %v405 = vsel %vm395, %v402, %v404
    %v406 = vsel %vm394, %v384, %v387
    %v407 = vsel %vm397, %v393, 1326507024
    %v408 = vsel %vm396, %v390, %v407
    %v409 = vsel %vm395, %v406, %v408
    %v410 = vshll.u32 %v370, 8
    %v411 = vmul.u32.u64.compose %v410, %v409
    %v412 = vextract.low.u32 %v411
    %v413 = vextract.high.u32 %v411
    %v414 = vmul.u32.u64.compose %v410, %v405
    %v415 = vextract.low.u32 %v414
    %v416 = vextract.high.u32 %v414
    %v417 = vmul.u32 %v410, %v401
    %v418 = vadd.s32 %v413, %v415
    %vm419 = vc.u32 %v413, %v415
    %v420 = vadd.s32 %v416, 1
    %v421 = vsel %vm419, %v420, %v416
    %v422 = vadd.s32 %v417, %v421
    %v423 = vadd.s32 %v422, 536870912
    %v424 = vshrl.u32 %v423, 30
    %v425 = vshll.u32 %v424, 30
    %v426 = vsub.s32 %v422, %v425
    %vm427 = vcmp.lt.s32.totalorder %v426, 0
    %v428 = vsub.s32 0, %v426
    %v429 = vsel %vm427, %v428, %v426
    %v430 = vclz %v429
    %v431 = vsub.s32 %v430, 2
    %vm432 = vcmp.gt.s32.totalorder 0, %v431
    %v433 = vsel %vm432, 0, %v431
    %v434 = vsub.s32 32, %v433
    %v435 = vshll.u32 %v426, %v433
    %v436 = vshrl.u32 %v418, %v434
    %v437 = vor.u32 %v435, %v436
    %v438 = vsub.s32 4294967266, %v433
    %v439 = vadd.s32 %v438, 127
    %v440 = vshll.u32 %v439, 23
    %v441 = vor.u32 4788187, %v440
    %v442 = vand.u32 2147483647, %v441
    %v444 = vcvt.s32.f32 %v437
    %v445 = vmul.f32 %v444, %v442
    %v446 = vxor.u32 %v445, 2147483648
    %v447 = vsel %vm364, %v446, %v445
    %v448 = vsub.s32 4, %v424
    %v449 = vsel %vm364, %v448, %v424
    %v450 = vsel %vm363, %v35, %v447
    %v451 = vsel %vm363, 0, %v449
    %v452 = vcosq.f32.pop %v450
    %v453 = vsinq.f32.pop %v450
    %vm454 = vweird.f32 %v35
    %v455 = vadd.s32 %v451, 3
    %v456 = vand.u32 %v455, 3
    %vm457 = vcmp.lt.s32.totalorder %v456, 2
    %vm458 = vcmp.eq.s32.totalorder %v456, 0
    %v459 = vxor.u32 %v453, 2147483648
    %v460 = vsel %vm458, %v452, %v459
    %vm461 = vcmp.eq.s32.totalorder %v456, 2
    %v462 = vxor.u32 %v452, 2147483648
    %v463 = vsel %vm461, %v462, %v453
    %v464 = vsel %vm457, %v460, %v463
    %v465 = vsel %vm454, nan, %v464
    %467 = vset.pattern.permute.xlu0 0
    %468 = vperm.xlu0 %467, %v256
    %v469 = vpop.permute.xlu0 %468
    %472 = vset.pattern.permute.xlu0 0
    %473 = vperm.xlu0 %472, %v257
    %v474 = vpop.permute.xlu0 %473
    %v476 = vmul.f32 %v469, %v361
    %v477 = vmul.f32 %v474, %v465
    %v478 = vadd.f32 %v254, %v476
    %v479 = vadd.f32 %v255, %v477
    %v480 = vld [vmem:[%s2] sm:$0xff]
    %v481 = vld [vmem:[%s2 + $0x8] sm:$0xff]
    %v482 = vadd.f32 %v480, %v478
    %v483 = vadd.f32 %v481, %v479
    %vm484 = vcmask 130048
    %485 = vst.msk [vmem:[#allocation2] sm:$0xff] %vm484, %v482
    %486 = vst.msk [vmem:[#allocation2 + $0x8] sm:$0xff] %vm484, %v483
    // Predicated region
    $region14: #{positional_encoding_forward.1} parent=1 // pred_check
      _
    $region15: #{positional_encoding_forward.1} parent=1 // pred_check_branch
      %488 = sbr.rel (0) target = $region17
    $region16: #{positional_encoding_forward.1} parent=1 // pred_region
      %s490 = ssub.s32 256, 256
      %491 = vsyncadd [#allocation3], %s490
      %s492 = sshll.u32 [#allocation2], 4
      %s493 = int_to_ptr.vmem [resolvable:$true] %s492
      %498 = dma.vmem_to_hbm [thread:$0]  %s493, 256, %s3, [#allocation3], 128, 128, 8
    $region17: #{positional_encoding_forward.1} parent=1 // pred_fallthru
      _
    // Predicated region
    $region18: #{positional_encoding_forward.1} parent=1 // pred_check
      _
    $region19: #{positional_encoding_forward.1} parent=1 // pred_check_branch
      %500 = sbr.rel (0) target = $region21
    $region20: #{positional_encoding_forward.1} parent=1 // pred_region
      %501 = dma.done [#allocation3], 256
    $region21: #{positional_encoding_forward.1} parent=1 // pred_fallthru
      _
    %502 = vsyncpa [#allocation3], 1

</llo_original>
